<compile_context>
chip_gen: v6e
topology: v6e:2x2x1
jax: 0.10.0
libtpu: 0.0.40
codegen_flags: <defaults>
</compile_context>

<pallas_src>
import jax
import jax.numpy as jnp
from jax import lax
from jax.experimental import pallas as pl
from jax.experimental.pallas import tpu as pltpu

EPS = 1e-10


def distance_kernel(sup_ref, img_ref, img_sq_ref, out_ref):
    # sup_ref    : (TS, B, D) support tile, streamed (auto double-buffered)
    # img_ref    : (B, D)     query image, resident across all S tiles
    # img_sq_ref : (1, B)     precomputed ||query||^2 (hoisted out of the loop)
    # out_ref    : (B, TS)    lane-dense similarity block
    sup = sup_ref[...]                     # native dtype, no full-tile f32 pre-cast
    img = img_ref[...]

    # Products in the native dtype; reductions accumulate in f32.
    dots = jnp.sum(sup * img[None, :, :], axis=-1, dtype=jnp.float32)   # (TS, B)
    sup_sq = jnp.sum(sup * sup, axis=-1, dtype=jnp.float32)             # (TS, B)
    img_sq = img_sq_ref[...]                                            # (1, B), f32

    # torch.cosine_similarity: x1.x2 / max(||x1||*||x2||, eps)
    #   == dots * rsqrt(max(||x1||^2 * ||x2||^2, eps^2))   (single EUP rsqrt)
    denom_sq = jnp.maximum(sup_sq * img_sq, EPS * EPS)                  # (TS, B)
    cos = dots * lax.rsqrt(denom_sq)                                    # (TS, B)

    # Small XLU transpose of the result tile -> unmasked, lane-dense (B, TS) store.
    out_ref[...] = cos.T.astype(out_ref.dtype)


def _vmem_capacity_bytes():
    try:
        return int(pltpu.get_tpu_info().vmem_capacity_bytes)
    except Exception:
        return 64 * 1024 * 1024   # conservative fallback (v7x physical VMEM)


def _pick_support_tile(S, B, D, vmem_cap):
    """Pick TS: lane-aligned (multiple of 128 or == S), padded-VMEM-aware, pipelined."""
    # Physical bytes of one support row-block in VMEM: last two dims (B, D) pad
    # to (ceil(B/8)*8, ceil(D/128)*128); budget as f32 (4 B) since reductions /
    # upcasts use f32 regardless of input dtype.
    row_bytes = (pl.cdiv(B, 8) * 8) * (pl.cdiv(D, 128) * 128) * 4

    # Tiny problems: a single grid step -- the ~0.35 us per-step overhead would
    # dominate any split, and a single tile easily fits VMEM.
    if S <= 128 or S * row_bytes <= 2 * 1024 * 1024:
        return S

    # Per double-buffered input tile budget: ~8 MiB on v7x (64 MiB VMEM),
    # ~16 MiB on v5e/v6e (128 MiB VMEM).  Total usage ~= 2 tiles (double
    # buffering) + ~2 tile-sized f32 temps, well under the raised scoped limit.
    per_buffer = vmem_cap // 8
    ts_budget = max(128, (per_buffer // row_bytes) // 128 * 128)
    # TODO(synk): for very large B*D (where even a 128-row tile overshoots the
    # per-buffer budget), add a D-reduction grid axis ("arbitrary") with f32
    # VMEM accumulators instead of relying on the raised VMEM limit.

    # Keep >= ~4 grid steps so tile DMAs pipeline behind compute and both v7x
    # TensorCores get work on the "parallel" axis.
    ts_pipe = max(128, (pl.cdiv(S, 4) // 128) * 128)
    return min(ts_budget, ts_pipe)


def distance_network(support_set, input_image, *, block_s=None):
    """support_set: (S, B, D), input_image: (B, D) -> similarities (B, S)."""
    S, B, D = support_set.shape
    assert input_image.shape == (B, D)
    itemsize = jnp.dtype(support_set.dtype).itemsize

    vmem_cap = _vmem_capacity_bytes()
    if block_s is not None:
        ts = min(S, block_s)
        # Output lane dim must be a multiple of 128 or the full extent S.
        assert ts == S or ts % 128 == 0, "block_s must be a multiple of 128 (or >= S)"
    else:
        ts = _pick_support_tile(S, B, D, vmem_cap)

    grid = (pl.cdiv(S, ts),)

    # Hoisted query-side work: ||q||^2 computed once (tiny (1, B) input that is
    # VMEM-resident across the whole grid).
    img_sq = jnp.sum(input_image.astype(jnp.float32) ** 2, axis=-1)[None, :]  # (1, B)

    cost = pl.CostEstimate(
        flops=4 * S * B * D,                  # dot + support norm (mul+add each)
        transcendentals=S * B,                # one rsqrt per similarity
        bytes_accessed=S * B * D * itemsize + B * D * itemsize + B * 4 + B * S * 4,
    )

    out = pl.pallas_call(
        distance_kernel,
        out_shape=jax.ShapeDtypeStruct((B, S), jnp.float32),
        grid=grid,
        in_specs=[
            # Support tiles stream through VMEM (auto double-buffered).
            pl.BlockSpec((ts, B, D), lambda s: (s, 0, 0)),
            # Query image + its norm^2: constant index_map -> resident across S.
            pl.BlockSpec((B, D), lambda s: (0, 0)),
            pl.BlockSpec((1, B), lambda s: (0, 0)),
        ],
        # Lane-dense (B, S) output; TS on the lane axis (unmasked stores when tiled).
        out_specs=pl.BlockSpec((B, ts), lambda s: (0, s)),
        compiler_params=pltpu.CompilerParams(
            dimension_semantics=("parallel",),          # shard S tiles across v7x's 2 TCs
            vmem_limit_bytes=int(vmem_cap * 3) // 4,    # explicit scoped-VMEM headroom
        ),
        cost_estimate=cost,
    )(support_set, input_image, img_sq)

    return out


if __name__ == "__main__":
    key = jax.random.PRNGKey(0)
    k1, k2, k3, k4 = jax.random.split(key, 4)

    def reference(support_set, input_image):
        # Pure-JAX torch.cosine_similarity semantics, then stack + t().
        dots = jnp.einsum("sbd,bd->sb", support_set, input_image)
        sn2 = jnp.sum(support_set ** 2, axis=-1)            # (S, B)
        in2 = jnp.sum(input_image ** 2, axis=-1)             # (B,)
        return (dots / jnp.maximum(jnp.sqrt(sn2 * in2[None, :]), EPS)).T   # (B, S)

    # Case 1: tiny 20-shot / batch 4 / 64-dim embeddings -> single tile, grid=(1,)
    # (per review: never split tiny shapes, the per-step overhead dominates).
    S1, B1, D1 = 20, 4, 64
    sup1 = jax.random.normal(k1, (S1, B1, D1), dtype=jnp.float32)
    img1 = jax.random.normal(k2, (B1, D1), dtype=jnp.float32)
    out1 = jax.block_until_ready(distance_network(sup1, img1))
    assert out1.shape == (B1, S1)
    assert jnp.allclose(out1, reference(sup1, img1), atol=1e-5, rtol=1e-5)

    # Case 2: larger support set with explicit 128-row tiles -> grid=(2,), which
    # exercises the streamed multi-tile path, the resident query, and the
    # lane-aligned (B, 128) output blocks.
    S2, B2, D2 = 256, 4, 64
    sup2 = jax.random.normal(k3, (S2, B2, D2), dtype=jnp.float32)
    img2 = jax.random.normal(k4, (B2, D2), dtype=jnp.float32)
    out2 = jax.block_until_ready(distance_network(sup2, img2, block_s=128))
    assert out2.shape == (B2, S2)
    assert jnp.allclose(out2, reference(sup2, img2), atol=1e-5, rtol=1e-5)

    print("KERNEL_OK")
</pallas_src>

<mosaic_0001>
module attributes {stable_mosaic.version = 11 : i64} {
  func.func @distance_kernel(%arg0: i32, %arg1: memref<20x4x64xf32, #tpu.memory_space<vmem>>, %arg2: memref<4x64xf32, #tpu.memory_space<vmem>>, %arg3: memref<1x4xf32, #tpu.memory_space<vmem>>, %arg4: memref<4x20xf32, #tpu.memory_space<vmem>>) attributes {dimension_semantics = [#tpu.dimension_semantics<parallel>], iteration_bounds = array<i64: 1>, scalar_prefetch = 0 : i64, scratch_operands = 0 : i64, tpu.core_type = #tpu.core_type<tc>, window_params = [{transform_indices = @transform_0, window_bounds = array<i64: 20, 4, 64>}, {pipeline_mode = #tpu.pipeline_mode<synchronous>, transform_indices = @transform_1, window_bounds = array<i64: 4, 64>}, {pipeline_mode = #tpu.pipeline_mode<synchronous>, transform_indices = @transform_2, window_bounds = array<i64: 1, 4>}, {transform_indices = @transform_3, window_bounds = array<i64: 4, 20>}]} {
    %c0 = arith.constant 0 : index
    %c0_0 = arith.constant 0 : index
    %c0_1 = arith.constant 0 : index
    %0 = vector.load %arg1[%c0, %c0_0, %c0_1] : memref<20x4x64xf32, #tpu.memory_space<vmem>>, vector<20x4x64xf32>
    %c0_2 = arith.constant 0 : index
    %c0_3 = arith.constant 0 : index
    %1 = vector.load %arg2[%c0_2, %c0_3] : memref<4x64xf32, #tpu.memory_space<vmem>>, vector<4x64xf32>
    %2 = vector.shape_cast %1 : vector<4x64xf32> to vector<1x4x64xf32>
    %3 = vector.broadcast %2 : vector<1x4x64xf32> to vector<20x4x64xf32>
    %4 = arith.mulf %0, %3 : vector<20x4x64xf32>
    %cst = arith.constant dense<0.000000e+00> : vector<20x4xf32>
    %5 = vector.multi_reduction <add>, %4, %cst [2] : vector<20x4x64xf32> to vector<20x4xf32>
    %6 = arith.mulf %0, %0 : vector<20x4x64xf32>
    %cst_4 = arith.constant dense<0.000000e+00> : vector<20x4xf32>
    %7 = vector.multi_reduction <add>, %6, %cst_4 [2] : vector<20x4x64xf32> to vector<20x4xf32>
    %c0_5 = arith.constant 0 : index
    %c0_6 = arith.constant 0 : index
    %8 = vector.load %arg3[%c0_5, %c0_6] : memref<1x4xf32, #tpu.memory_space<vmem>>, vector<1x4xf32>
    %9 = vector.broadcast %8 : vector<1x4xf32> to vector<20x4xf32>
    %10 = arith.mulf %7, %9 : vector<20x4xf32>
    %cst_7 = arith.constant 9.99999968E-21 : f32
    %11 = vector.broadcast %cst_7 : f32 to vector<20x4xf32>
    %12 = arith.maximumf %10, %11 : vector<20x4xf32>
    %13 = math.rsqrt %12 : vector<20x4xf32>
    %14 = arith.mulf %5, %13 : vector<20x4xf32>
    %15 = tpu.transpose %14, [1, 0] : vector<20x4xf32> -> vector<4x20xf32>
    %c0_8 = arith.constant 0 : index
    %c0_9 = arith.constant 0 : index
    %16 = vector.load %arg4[%c0_8, %c0_9] : memref<4x20xf32, #tpu.memory_space<vmem>>, vector<4x20xf32>
    tpu.vector_store %arg4[%c0_8, %c0_9], %15 {strides = array<i32>} : memref<4x20xf32, #tpu.memory_space<vmem>>, vector<4x20xf32>,
    return
  }
  func.func @transform_0(%arg0: i32) -> (i32, i32, i32) {
    %c0_i32 = arith.constant 0 : i32
    %c0_i32_0 = arith.constant 0 : i32
    %c0_i32_1 = arith.constant 0 : i32
    return %arg0, %c0_i32, %c0_i32_0 : i32, i32, i32
  }
  func.func @transform_1(%arg0: i32) -> (i32, i32) {
    %c0_i32 = arith.constant 0 : i32
    %c0_i32_0 = arith.constant 0 : i32
    %c0_i32_1 = arith.constant 0 : i32
    return %c0_i32, %c0_i32_0 : i32, i32
  }
  func.func @transform_2(%arg0: i32) -> (i32, i32) {
    %c0_i32 = arith.constant 0 : i32
    %c0_i32_0 = arith.constant 0 : i32
    %c0_i32_1 = arith.constant 0 : i32
    return %c0_i32, %c0_i32_0 : i32, i32
  }
  func.func @transform_3(%arg0: i32) -> (i32, i32) {
    %c0_i32 = arith.constant 0 : i32
    %c0_i32_0 = arith.constant 0 : i32
    return %c0_i32, %arg0 : i32, i32
  }
}

</mosaic_0001>

<llo_original>
// kernel: tpu_custom_call.1
$region0: #{tpu_custom_call.1}
  #allocation0 [shape = 'u32[]', space=smem, size = 0x4, offset = 0x4, fixed_abs, tag = 'smem constant byte address 0x4 - core index']
  #allocation1 [shape = 'u32[144,128]{1,0:T(1,128)}', space=vmem, size = 0x12000, scoped, tag = 'internal scratch']
  %s0 = inlined_call_operand.hbm [shape: f32[20,4,64], index: 0, kind: input, shape index: {}]
  %s1 = inlined_call_operand.hbm [shape: f32[4,64], index: 1, kind: input, shape index: {}]
  %s2 = inlined_call_operand.vmem [shape: f32[1,4], index: 2, kind: input, shape index: {}]
  %s3 = inlined_call_operand.hbm [shape: f32[4,20], index: 3, kind: output, shape index: {}]
  %s4 = sld [smem:[#allocation0]]
  $region30: #{tpu_custom_call.1} parent=0
    _
  %s6 = ssub.s32 1, %s4
  %s7 = scalar_select 0, %s6, %s4
  $region1: #{tpu_custom_call.1} parent=0
    #allocation2 [shape = 'u8[40960]{0}', space=vmem, size = 0xa000, scoped, tag = 'input window, operand 0, single buffered']
    #allocation3 [shape = 's32[1]{0}', space=sflag, size = 0x4, scoped, tag = 'scoped memory for tpu_custom_call.1']
    #allocation4 [shape = 's32[1]{0}', space=sflag, size = 0x4, scoped, tag = 'scoped memory for tpu_custom_call.1']
    #allocation5 [shape = 'u8[2048]{0}', space=vmem, size = 0x800, scoped, tag = 'input window, operand 1, single buffered']
    #allocation6 [shape = 's32[1]{0}', space=sflag, size = 0x4, scoped, tag = 'scoped memory for tpu_custom_call.1']
    #allocation7 [shape = 'u8[2048]{0}', space=vmem, size = 0x800, scoped, tag = 'output window, operand 0, single buffered']
    %8 = vsyncpa [#allocation3], 0
    %9 = vsyncpa [#allocation6], 0
    %10 = vsyncpa [#allocation4], 0
    // Predicated region
    $region2: #{tpu_custom_call.1} parent=1 // pred_check
      _
    $region3: #{tpu_custom_call.1} parent=1 // pred_check_branch
      %12 = sbr.rel (0) target = $region5
    $region4: #{tpu_custom_call.1} parent=1 // pred_region
      %s14 = ssub.s32 1280, 1280
      %15 = vsyncadd [#allocation3], %s14
      %s16 = sshll.u32 [#allocation2], 4
      %s17 = int_to_ptr.vmem [resolvable:$true] %s16
      %22 = dma.hbm_to_vmem [thread:$0]  %s0, 1280, %s17, [#allocation3], 64, 64, 4
    $region5: #{tpu_custom_call.1} parent=1 // pred_fallthru
      _
    // Predicated region
    $region6: #{tpu_custom_call.1} parent=1 // pred_check
      _
    $region7: #{tpu_custom_call.1} parent=1 // pred_check_branch
      %24 = sbr.rel (0) target = $region9
    $region8: #{tpu_custom_call.1} parent=1 // pred_region
      %s26 = ssub.s32 64, 64
      %27 = vsyncadd [#allocation6], %s26
      %s29 = sshll.u32 [#allocation5], 4
      %s30 = int_to_ptr.vmem [resolvable:$true] %s29
      %32 = dma.hbm_to_vmem [thread:$0]  %s1, 64, %s30, [#allocation6]
    $region9: #{tpu_custom_call.1} parent=1 // pred_fallthru
      _
    // Predicated region
    $region10: #{tpu_custom_call.1} parent=1 // pred_check
      _
    $region11: #{tpu_custom_call.1} parent=1 // pred_check_branch
      %34 = sbr.rel (0) target = $region13
    $region12: #{tpu_custom_call.1} parent=1 // pred_region
      _
    $region13: #{tpu_custom_call.1} parent=1 // pred_fallthru
      _
    // Predicated region
    $region14: #{tpu_custom_call.1} parent=1 // pred_check
      _
    $region15: #{tpu_custom_call.1} parent=1 // pred_check_branch
      %36 = sbr.rel (0) target = $region17
    $region16: #{tpu_custom_call.1} parent=1 // pred_region
      %37 = dma.done [#allocation3], 1280
    $region17: #{tpu_custom_call.1} parent=1 // pred_fallthru
      _
    // Predicated region
    $region18: #{tpu_custom_call.1} parent=1 // pred_check
      _
    $region19: #{tpu_custom_call.1} parent=1 // pred_check_branch
      %39 = sbr.rel (0) target = $region21
    $region20: #{tpu_custom_call.1} parent=1 // pred_region
      %40 = dma.done [#allocation6], 64
    $region21: #{tpu_custom_call.1} parent=1 // pred_fallthru
      _
    %v41 = vld [vmem:[#allocation2] sm:$0xf]
    %v42 = vld [vmem:[#allocation2 + $0x4] sm:$0xf]
    %v43 = vld [vmem:[#allocation2 + $0x8] sm:$0xf]
    %v44 = vld [vmem:[#allocation2 + $0xc] sm:$0xf]
    %v45 = vld [vmem:[#allocation2 + $0x10] sm:$0xf]
    %v46 = vld [vmem:[#allocation2 + $0x14] sm:$0xf]
    %v47 = vld [vmem:[#allocation2 + $0x18] sm:$0xf]
    %v48 = vld [vmem:[#allocation2 + $0x1c] sm:$0xf]
    %v49 = vld [vmem:[#allocation2 + $0x20] sm:$0xf]
    %v50 = vld [vmem:[#allocation2 + $0x24] sm:$0xf]
    %v51 = vld [vmem:[#allocation2 + $0x28] sm:$0xf]
    %v52 = vld [vmem:[#allocation2 + $0x2c] sm:$0xf]
    %v53 = vld [vmem:[#allocation2 + $0x30] sm:$0xf]
    %v54 = vld [vmem:[#allocation2 + $0x34] sm:$0xf]
    %v55 = vld [vmem:[#allocation2 + $0x38] sm:$0xf]
    %v56 = vld [vmem:[#allocation2 + $0x3c] sm:$0xf]
    %v57 = vld [vmem:[#allocation2 + $0x40] sm:$0xf]
    %v58 = vld [vmem:[#allocation2 + $0x44] sm:$0xf]
    %v59 = vld [vmem:[#allocation2 + $0x48] sm:$0xf]
    %v60 = vld [vmem:[#allocation2 + $0x4c] sm:$0xf]
    %v61 = vld [vmem:[#allocation5] sm:$0xf]
    %v62 = vmul.f32 %v41, %v61
    %v63 = vmul.f32 %v42, %v61
    %v64 = vmul.f32 %v43, %v61
    %v65 = vmul.f32 %v44, %v61
    %v66 = vmul.f32 %v45, %v61
    %v67 = vmul.f32 %v46, %v61
    %v68 = vmul.f32 %v47, %v61
    %v69 = vmul.f32 %v48, %v61
    %v70 = vmul.f32 %v49, %v61
    %v71 = vmul.f32 %v50, %v61
    %v72 = vmul.f32 %v51, %v61
    %v73 = vmul.f32 %v52, %v61
    %v74 = vmul.f32 %v53, %v61
    %v75 = vmul.f32 %v54, %v61
    %v76 = vmul.f32 %v55, %v61
    %v77 = vmul.f32 %v56, %v61
    %v78 = vmul.f32 %v57, %v61
    %v79 = vmul.f32 %v58, %v61
    %v80 = vmul.f32 %v59, %v61
    %v81 = vmul.f32 %v60, %v61
    %vm82 = vcmask 519168
    %v83 = vsel %vm82, %v62, 0.0
    %84 = vadd.xlane.f32.xlu0 %v83
    %v85 = vpop.xlane.xlu0 %84
    %v86 = vsel %vm82, %v63, 0.0
    %87 = vadd.xlane.f32.xlu0 %v86
    %v88 = vpop.xlane.xlu0 %87
    %v89 = vsel %vm82, %v64, 0.0
    %90 = vadd.xlane.f32.xlu0 %v89
    %v91 = vpop.xlane.xlu0 %90
    %v92 = vsel %vm82, %v65, 0.0
    %93 = vadd.xlane.f32.xlu0 %v92
    %v94 = vpop.xlane.xlu0 %93
    %v95 = vsel %vm82, %v66, 0.0
    %96 = vadd.xlane.f32.xlu0 %v95
    %v97 = vpop.xlane.xlu0 %96
    %v98 = vsel %vm82, %v67, 0.0
    %99 = vadd.xlane.f32.xlu0 %v98
    %v100 = vpop.xlane.xlu0 %99
    %v101 = vsel %vm82, %v68, 0.0
    %102 = vadd.xlane.f32.xlu0 %v101
    %v103 = vpop.xlane.xlu0 %102
    %v104 = vsel %vm82, %v69, 0.0
    %105 = vadd.xlane.f32.xlu0 %v104
    %v106 = vpop.xlane.xlu0 %105
    %v107 = vsel %vm82, %v70, 0.0
    %108 = vadd.xlane.f32.xlu0 %v107
    %v109 = vpop.xlane.xlu0 %108
    %v110 = vsel %vm82, %v71, 0.0
    %111 = vadd.xlane.f32.xlu0 %v110
    %v112 = vpop.xlane.xlu0 %111
    %v113 = vsel %vm82, %v72, 0.0
    %114 = vadd.xlane.f32.xlu0 %v113
    %v115 = vpop.xlane.xlu0 %114
    %v116 = vsel %vm82, %v73, 0.0
    %117 = vadd.xlane.f32.xlu0 %v116
    %v118 = vpop.xlane.xlu0 %117
    %v119 = vsel %vm82, %v74, 0.0
    %120 = vadd.xlane.f32.xlu0 %v119
    %v121 = vpop.xlane.xlu0 %120
    %v122 = vsel %vm82, %v75, 0.0
    %123 = vadd.xlane.f32.xlu0 %v122
    %v124 = vpop.xlane.xlu0 %123
    %v125 = vsel %vm82, %v76, 0.0
    %126 = vadd.xlane.f32.xlu0 %v125
    %v127 = vpop.xlane.xlu0 %126
    %v128 = vsel %vm82, %v77, 0.0
    %129 = vadd.xlane.f32.xlu0 %v128
    %v130 = vpop.xlane.xlu0 %129
    %v131 = vsel %vm82, %v78, 0.0
    %132 = vadd.xlane.f32.xlu0 %v131
    %v133 = vpop.xlane.xlu0 %132
    %v134 = vsel %vm82, %v79, 0.0
    %135 = vadd.xlane.f32.xlu0 %v134
    %v136 = vpop.xlane.xlu0 %135
    %v137 = vsel %vm82, %v80, 0.0
    %138 = vadd.xlane.f32.xlu0 %v137
    %v139 = vpop.xlane.xlu0 %138
    %v140 = vsel %vm82, %v81, 0.0
    %141 = vadd.xlane.f32.xlu0 %v140
    %v142 = vpop.xlane.xlu0 %141
    %v143 = vmul.f32 %v41, %v41
    %v144 = vmul.f32 %v42, %v42
    %v145 = vmul.f32 %v43, %v43
    %v146 = vmul.f32 %v44, %v44
    %v147 = vmul.f32 %v45, %v45
    %v148 = vmul.f32 %v46, %v46
    %v149 = vmul.f32 %v47, %v47
    %v150 = vmul.f32 %v48, %v48
    %v151 = vmul.f32 %v49, %v49
    %v152 = vmul.f32 %v50, %v50
    %v153 = vmul.f32 %v51, %v51
    %v154 = vmul.f32 %v52, %v52
    %v155 = vmul.f32 %v53, %v53
    %v156 = vmul.f32 %v54, %v54
    %v157 = vmul.f32 %v55, %v55
    %v158 = vmul.f32 %v56, %v56
    %v159 = vmul.f32 %v57, %v57
    %v160 = vmul.f32 %v58, %v58
    %v161 = vmul.f32 %v59, %v59
    %v162 = vmul.f32 %v60, %v60
    %v163 = vsel %vm82, %v143, 0.0
    %164 = vadd.xlane.f32.xlu0 %v163
    %v165 = vpop.xlane.xlu0 %164
    %v166 = vsel %vm82, %v144, 0.0
    %167 = vadd.xlane.f32.xlu0 %v166
    %v168 = vpop.xlane.xlu0 %167
    %v169 = vsel %vm82, %v145, 0.0
    %170 = vadd.xlane.f32.xlu0 %v169
    %v171 = vpop.xlane.xlu0 %170
    %v172 = vsel %vm82, %v146, 0.0
    %173 = vadd.xlane.f32.xlu0 %v172
    %v174 = vpop.xlane.xlu0 %173
    %v175 = vsel %vm82, %v147, 0.0
    %176 = vadd.xlane.f32.xlu0 %v175
    %v177 = vpop.xlane.xlu0 %176
    %v178 = vsel %vm82, %v148, 0.0
    %179 = vadd.xlane.f32.xlu0 %v178
    %v180 = vpop.xlane.xlu0 %179
    %v181 = vsel %vm82, %v149, 0.0
    %182 = vadd.xlane.f32.xlu0 %v181
    %v183 = vpop.xlane.xlu0 %182
    %v184 = vsel %vm82, %v150, 0.0
    %185 = vadd.xlane.f32.xlu0 %v184
    %v186 = vpop.xlane.xlu0 %185
    %v187 = vsel %vm82, %v151, 0.0
    %188 = vadd.xlane.f32.xlu0 %v187
    %v189 = vpop.xlane.xlu0 %188
    %v190 = vsel %vm82, %v152, 0.0
    %191 = vadd.xlane.f32.xlu0 %v190
    %v192 = vpop.xlane.xlu0 %191
    %v193 = vsel %vm82, %v153, 0.0
    %194 = vadd.xlane.f32.xlu0 %v193
    %v195 = vpop.xlane.xlu0 %194
    %v196 = vsel %vm82, %v154, 0.0
    %197 = vadd.xlane.f32.xlu0 %v196
    %v198 = vpop.xlane.xlu0 %197
    %v199 = vsel %vm82, %v155, 0.0
    %200 = vadd.xlane.f32.xlu0 %v199
    %v201 = vpop.xlane.xlu0 %200
    %v202 = vsel %vm82, %v156, 0.0
    %203 = vadd.xlane.f32.xlu0 %v202
    %v204 = vpop.xlane.xlu0 %203
    %v205 = vsel %vm82, %v157, 0.0
    %206 = vadd.xlane.f32.xlu0 %v205
    %v207 = vpop.xlane.xlu0 %206
    %v208 = vsel %vm82, %v158, 0.0
    %209 = vadd.xlane.f32.xlu0 %v208
    %v210 = vpop.xlane.xlu0 %209
    %v211 = vsel %vm82, %v159, 0.0
    %212 = vadd.xlane.f32.xlu0 %v211
    %v213 = vpop.xlane.xlu0 %212
    %v214 = vsel %vm82, %v160, 0.0
    %215 = vadd.xlane.f32.xlu0 %v214
    %v216 = vpop.xlane.xlu0 %215
    %v217 = vsel %vm82, %v161, 0.0
    %218 = vadd.xlane.f32.xlu0 %v217
    %v219 = vpop.xlane.xlu0 %218
    %v220 = vsel %vm82, %v162, 0.0
    %221 = vadd.xlane.f32.xlu0 %v220
    %v222 = vpop.xlane.xlu0 %221
    %v223 = vld [vmem:[%s2] sm:$0x1]
    %v225 = vlaneseq
    %v226 = vshrl.u32 %v225, 7
    %v227 = vsub.s32 0, %v226
    %v228 = vrot.slane %v223, %v227
    %230 = vbcast.lane.b32.xlu0 %v228, 256
    %v231 = vpop.permute.xlu0 %230
    %v233 = vmul.f32 %v165, %v231
    %v234 = vmul.f32 %v168, %v231
    %v235 = vmul.f32 %v171, %v231
    %v236 = vmul.f32 %v174, %v231
    %v237 = vmul.f32 %v177, %v231
    %v238 = vmul.f32 %v180, %v231
    %v239 = vmul.f32 %v183, %v231
    %v240 = vmul.f32 %v186, %v231
    %v241 = vmul.f32 %v189, %v231
    %v242 = vmul.f32 %v192, %v231
    %v243 = vmul.f32 %v195, %v231
    %v244 = vmul.f32 %v198, %v231
    %v245 = vmul.f32 %v201, %v231
    %v246 = vmul.f32 %v204, %v231
    %v247 = vmul.f32 %v207, %v231
    %v248 = vmul.f32 %v210, %v231
    %v249 = vmul.f32 %v213, %v231
    %v250 = vmul.f32 %v216, %v231
    %v251 = vmul.f32 %v219, %v231
    %v252 = vmul.f32 %v222, %v231
    %v253 = vmax.f32 %v233, 1e-20
    %v254 = vmax.f32 %v234, 1e-20
    %v255 = vmax.f32 %v235, 1e-20
    %v256 = vmax.f32 %v236, 1e-20
    %v257 = vmax.f32 %v237, 1e-20
    %v258 = vmax.f32 %v238, 1e-20
    %v259 = vmax.f32 %v239, 1e-20
    %v260 = vmax.f32 %v240, 1e-20
    %v261 = vmax.f32 %v241, 1e-20
    %v262 = vmax.f32 %v242, 1e-20
    %v263 = vmax.f32 %v243, 1e-20
    %v264 = vmax.f32 %v244, 1e-20
    %v265 = vmax.f32 %v245, 1e-20
    %v266 = vmax.f32 %v246, 1e-20
    %v267 = vmax.f32 %v247, 1e-20
    %v268 = vmax.f32 %v248, 1e-20
    %v269 = vmax.f32 %v249, 1e-20
    %v270 = vmax.f32 %v250, 1e-20
    %v271 = vmax.f32 %v251, 1e-20
    %v272 = vmax.f32 %v252, 1e-20
    %v273 = vrsqrt.pop %v253
    %v274 = vrsqrt.pop %v254
    %v275 = vrsqrt.pop %v255
    %v276 = vrsqrt.pop %v256
    %v277 = vrsqrt.pop %v257
    %v278 = vrsqrt.pop %v258
    %v279 = vrsqrt.pop %v259
    %v280 = vrsqrt.pop %v260
    %v281 = vrsqrt.pop %v261
    %v282 = vrsqrt.pop %v262
    %v283 = vrsqrt.pop %v263
    %v284 = vrsqrt.pop %v264
    %v285 = vrsqrt.pop %v265
    %v286 = vrsqrt.pop %v266
    %v287 = vrsqrt.pop %v267
    %v288 = vrsqrt.pop %v268
    %v289 = vrsqrt.pop %v269
    %v290 = vrsqrt.pop %v270
    %v291 = vrsqrt.pop %v271
    %v292 = vrsqrt.pop %v272
    %v293 = vmul.f32 %v85, %v273
    %v294 = vmul.f32 %v88, %v274
    %v295 = vmul.f32 %v91, %v275
    %v296 = vmul.f32 %v94, %v276
    %v297 = vmul.f32 %v97, %v277
    %v298 = vmul.f32 %v100, %v278
    %v299 = vmul.f32 %v103, %v279
    %v300 = vmul.f32 %v106, %v280
    %v301 = vmul.f32 %v109, %v281
    %v302 = vmul.f32 %v112, %v282
    %v303 = vmul.f32 %v115, %v283
    %v304 = vmul.f32 %v118, %v284
    %v305 = vmul.f32 %v121, %v285
    %v306 = vmul.f32 %v124, %v286
    %v307 = vmul.f32 %v127, %v287
    %v308 = vmul.f32 %v130, %v288
    %v309 = vmul.f32 %v133, %v289
    %v310 = vmul.f32 %v136, %v290
    %v311 = vmul.f32 %v139, %v291
    %v312 = vmul.f32 %v142, %v292
    %333 = vset.pattern.permute.xlu0 0
    %334 = vperm.xlu0 %333, %v293
    %v335 = vpop.permute.xlu0 %334
    %336 = vset.pattern.permute.xlu0 0
    %337 = vperm.xlu0 %336, %v294
    %v338 = vpop.permute.xlu0 %337
    %339 = vset.pattern.permute.xlu0 0
    %340 = vperm.xlu0 %339, %v295
    %v341 = vpop.permute.xlu0 %340
    %342 = vset.pattern.permute.xlu0 0
    %343 = vperm.xlu0 %342, %v296
    %v344 = vpop.permute.xlu0 %343
    %345 = vset.pattern.permute.xlu0 0
    %346 = vperm.xlu0 %345, %v297
    %v347 = vpop.permute.xlu0 %346
    %348 = vset.pattern.permute.xlu0 0
    %349 = vperm.xlu0 %348, %v298
    %v350 = vpop.permute.xlu0 %349
    %351 = vset.pattern.permute.xlu0 0
    %352 = vperm.xlu0 %351, %v299
    %v353 = vpop.permute.xlu0 %352
    %354 = vset.pattern.permute.xlu0 0
    %355 = vperm.xlu0 %354, %v300
    %v356 = vpop.permute.xlu0 %355
    %357 = vset.pattern.permute.xlu0 0
    %358 = vperm.xlu0 %357, %v301
    %v359 = vpop.permute.xlu0 %358
    %360 = vset.pattern.permute.xlu0 0
    %361 = vperm.xlu0 %360, %v302
    %v362 = vpop.permute.xlu0 %361
    %363 = vset.pattern.permute.xlu0 0
    %364 = vperm.xlu0 %363, %v303
    %v365 = vpop.permute.xlu0 %364
    %366 = vset.pattern.permute.xlu0 0
    %367 = vperm.xlu0 %366, %v304
    %v368 = vpop.permute.xlu0 %367
    %369 = vset.pattern.permute.xlu0 0
    %370 = vperm.xlu0 %369, %v305
    %v371 = vpop.permute.xlu0 %370
    %372 = vset.pattern.permute.xlu0 0
    %373 = vperm.xlu0 %372, %v306
    %v374 = vpop.permute.xlu0 %373
    %375 = vset.pattern.permute.xlu0 0
    %376 = vperm.xlu0 %375, %v307
    %v377 = vpop.permute.xlu0 %376
    %378 = vset.pattern.permute.xlu0 0
    %379 = vperm.xlu0 %378, %v308
    %v380 = vpop.permute.xlu0 %379
    %381 = vset.pattern.permute.xlu0 0
    %382 = vperm.xlu0 %381, %v309
    %v383 = vpop.permute.xlu0 %382
    %384 = vset.pattern.permute.xlu0 0
    %385 = vperm.xlu0 %384, %v310
    %v386 = vpop.permute.xlu0 %385
    %387 = vset.pattern.permute.xlu0 0
    %388 = vperm.xlu0 %387, %v311
    %v389 = vpop.permute.xlu0 %388
    %390 = vset.pattern.permute.xlu0 0
    %391 = vperm.xlu0 %390, %v312
    %v392 = vpop.permute.xlu0 %391
    %v393 = vlaneseq
    %v394 = vand.u32 %v393, 127
    %v395 = vlaneseq
    %v396 = vshrl.u32 %v395, 7
    %v397 = vsub.s32 %v394, %v396
    %v398 = vrot.slane %v335, %v397
    %v399 = vlaneseq
    %v400 = vshrl.u32 %v399, 7
    %v401 = vsub.s32 %v394, %v400
    %v402 = vrot.slane %v338, %v401
    %v403 = vlaneseq
    %v404 = vshrl.u32 %v403, 7
    %v405 = vsub.s32 %v394, %v404
    %v406 = vrot.slane %v341, %v405
    %v407 = vlaneseq
    %v408 = vshrl.u32 %v407, 7
    %v409 = vsub.s32 %v394, %v408
    %v410 = vrot.slane %v344, %v409
    %v411 = vlaneseq
    %v412 = vshrl.u32 %v411, 7
    %v413 = vsub.s32 %v394, %v412
    %v414 = vrot.slane %v347, %v413
    %v415 = vlaneseq
    %v416 = vshrl.u32 %v415, 7
    %v417 = vsub.s32 %v394, %v416
    %v418 = vrot.slane %v350, %v417
    %v419 = vlaneseq
    %v420 = vshrl.u32 %v419, 7
    %v421 = vsub.s32 %v394, %v420
    %v422 = vrot.slane %v353, %v421
    %v423 = vlaneseq
    %v424 = vshrl.u32 %v423, 7
    %v425 = vsub.s32 %v394, %v424
    %v426 = vrot.slane %v356, %v425
    %v427 = vlaneseq
    %v428 = vshrl.u32 %v427, 7
    %v429 = vsub.s32 %v394, %v428
    %v430 = vrot.slane %v359, %v429
    %v431 = vlaneseq
    %v432 = vshrl.u32 %v431, 7
    %v433 = vsub.s32 %v394, %v432
    %v434 = vrot.slane %v362, %v433
    %v435 = vlaneseq
    %v436 = vshrl.u32 %v435, 7
    %v437 = vsub.s32 %v394, %v436
    %v438 = vrot.slane %v365, %v437
    %v439 = vlaneseq
    %v440 = vshrl.u32 %v439, 7
    %v441 = vsub.s32 %v394, %v440
    %v442 = vrot.slane %v368, %v441
    %v443 = vlaneseq
    %v444 = vshrl.u32 %v443, 7
    %v445 = vsub.s32 %v394, %v444
    %v446 = vrot.slane %v371, %v445
    %v447 = vlaneseq
    %v448 = vshrl.u32 %v447, 7
    %v449 = vsub.s32 %v394, %v448
    %v450 = vrot.slane %v374, %v449
    %v451 = vlaneseq
    %v452 = vshrl.u32 %v451, 7
    %v453 = vsub.s32 %v394, %v452
    %v454 = vrot.slane %v377, %v453
    %v455 = vlaneseq
    %v456 = vshrl.u32 %v455, 7
    %v457 = vsub.s32 %v394, %v456
    %v458 = vrot.slane %v380, %v457
    %v459 = vlaneseq
    %v460 = vshrl.u32 %v459, 7
    %v461 = vsub.s32 %v394, %v460
    %v462 = vrot.slane %v383, %v461
    %v463 = vlaneseq
    %v464 = vshrl.u32 %v463, 7
    %v465 = vsub.s32 %v394, %v464
    %v466 = vrot.slane %v386, %v465
    %v467 = vlaneseq
    %v468 = vshrl.u32 %v467, 7
    %v469 = vsub.s32 %v394, %v468
    %v470 = vrot.slane %v389, %v469
    %v471 = vlaneseq
    %v472 = vshrl.u32 %v471, 7
    %v473 = vsub.s32 %v394, %v472
    %v474 = vrot.slane %v392, %v473
    %vm475 = vcmask 1041409
    %v476 = vsel %vm475, %v402, %v398
    %vm477 = vcmask 1042434
    %v478 = vsel %vm477, %v406, %v476
    %vm479 = vcmask 1043459
    %v480 = vsel %vm479, %v410, %v478
    %vm481 = vcmask 1044484
    %v482 = vsel %vm481, %v414, %v480
    %vm483 = vcmask 1045509
    %v484 = vsel %vm483, %v418, %v482
    %vm485 = vcmask 1046534
    %v486 = vsel %vm485, %v422, %v484
    %vm487 = vcmask 1047559
    %v488 = vsel %vm487, %v426, %v486
    %v489 = vsel %vm475, %v434, %v430
    %v490 = vsel %vm477, %v438, %v489
    %v491 = vsel %vm479, %v442, %v490
    %v492 = vsel %vm481, %v446, %v491
    %v493 = vsel %vm483, %v450, %v492
    %v494 = vsel %vm485, %v454, %v493
    %v495 = vsel %vm487, %v458, %v494
    %v496 = vsel %vm475, %v466, %v462
    %v497 = vsel %vm477, %v470, %v496
    %v498 = vsel %vm479, %v474, %v497
    %502 = vxpose.xlu0.b32.start [1/16] %v488, 128
    %503 = vxpose.xlu0.b32.cont [2/16] %v495, 128
    %504 = vxpose.xlu0.b32.cont [3/16] %v498, 128
    %505 = vxpose.xlu0.b32.cont [4/16] 0.0, 128
    %506 = vxpose.xlu0.b32.cont [5/16] 0.0, 128
    %507 = vxpose.xlu0.b32.cont [6/16] 0.0, 128
    %508 = vxpose.xlu0.b32.cont [7/16] 0.0, 128
    %509 = vxpose.xlu0.b32.cont [8/16] 0.0, 128
    %510 = vxpose.xlu0.b32.cont [9/16] 0.0, 128
    %511 = vxpose.xlu0.b32.cont [10/16] 0.0, 128
    %512 = vxpose.xlu0.b32.cont [11/16] 0.0, 128
    %513 = vxpose.xlu0.b32.cont [12/16] 0.0, 128
    %514 = vxpose.xlu0.b32.cont [13/16] 0.0, 128
    %515 = vxpose.xlu0.b32.cont [14/16] 0.0, 128
    %516 = vxpose.xlu0.b32.cont [15/16] 0.0, 128
    %517 = vxpose.xlu0.b32.end [16/16] 0.0, 128
    %v518 = vpop.trf.xlu0
    %v519 = vpop.trf.xlu0
    %v520 = vpop.trf.xlu0
    %v521 = vpop.trf.xlu0
    %v522 = vpop.trf.xlu0
    %v523 = vpop.trf.xlu0
    %v524 = vpop.trf.xlu0
    %v525 = vpop.trf.xlu0
    %v526 = vpop.trf.xlu0
    %v527 = vpop.trf.xlu0
    %v528 = vpop.trf.xlu0
    %v529 = vpop.trf.xlu0
    %v530 = vpop.trf.xlu0
    %v531 = vpop.trf.xlu0
    %v532 = vpop.trf.xlu0
    %v533 = vpop.trf.xlu0
    %vm534 = vcmask 158720
    %535 = vst.msk [vmem:[#allocation7] sm:$0xf] %vm534, %v518
    // Predicated region
    $region22: #{tpu_custom_call.1} parent=1 // pred_check
      _
    $region23: #{tpu_custom_call.1} parent=1 // pred_check_branch
      %537 = sbr.rel (0) target = $region25
    $region24: #{tpu_custom_call.1} parent=1 // pred_region
      %s539 = ssub.s32 64, 64
      %540 = vsyncadd [#allocation4], %s539
      %s542 = sshll.u32 [#allocation7], 4
      %s543 = int_to_ptr.vmem [resolvable:$true] %s542
      %545 = dma.vmem_to_hbm [thread:$0]  %s543, 64, %s3, [#allocation4]
    $region25: #{tpu_custom_call.1} parent=1 // pred_fallthru
      _
    // Predicated region
    $region26: #{tpu_custom_call.1} parent=1 // pred_check
      _
    $region27: #{tpu_custom_call.1} parent=1 // pred_check_branch
      %547 = sbr.rel (0) target = $region29
    $region28: #{tpu_custom_call.1} parent=1 // pred_region
      %548 = dma.done [#allocation4], 64
    $region29: #{tpu_custom_call.1} parent=1 // pred_fallthru
      _
    %549 = vsyncpa [#allocation3], 1
    %550 = vsyncpa [#allocation6], 1
    %551 = vsyncpa [#allocation4], 1

</llo_original>
